<compile_context>
chip_gen: v7x
topology: tpu7x:2x2x1
jax: 0.10.0
libtpu: 0.0.40
codegen_flags: <defaults>
</compile_context>

<pallas_src>
import functools

import jax
import jax.numpy as jnp
from jax.experimental import pallas as pl
from jax.experimental.pallas import tpu as pltpu

H = W = 16          # spatial size
HW = H * W          # 256 -> lane-dense minor dimension (2 lane tiles)
COUT = 32           # conv1 output channels
K = 3               # kernel size (padding=1, stride=1 -> same spatial size)
KK = K * K          # 9 fused taps


def conv3x3_kernel(x_ref, w_ref, b_ref, o_ref, x9_ref, *, nb, out_dtype):
    """One grid step processes `nb` images.

    x_ref : (nb, 3, HW) f32   row-shifted slabs: x_ref[n, ky, h*W + w] = x_hpad[n, h+ky, w]
    w_ref : (COUT, 9)   f32   w_ref[c, kx*3 + ky] = weight[c, 0, ky, kx]
    b_ref : (COUT, 1)   f32   bias
    o_ref : (nb, COUT, HW)    NCHW output (flattened spatial), minor dim = 256 lanes
    x9_ref: (nb, 9, HW) f32   VMEM scratch holding all 9 taps per image
    """
    # ---- Block-wide tap construction: 2 rolls + 2 selects per STEP (not per image) ----
    x = x_ref[...]                                                 # (nb, 3, HW): kx=1 taps
    col = jax.lax.broadcasted_iota(jnp.int32, (1, K, HW), 2) % W   # column index per lane
    not_first_col = col != 0                                       # valid lanes of kx=0 tap
    not_last_col = col != (W - 1)                                  # valid lanes of kx=2 tap
    # The lane roll wraps across row boundaries exactly at w==0 / w==W-1, where the true
    # zero-padded value is 0, so mask those lanes. pltpu.roll -> XLU rotate slot.
    left = jnp.where(not_first_col, pltpu.roll(x, 1, axis=2), 0.0)        # kx=0 taps
    right = jnp.where(not_last_col, pltpu.roll(x, HW - 1, axis=2), 0.0)   # kx=2 taps
    x9_ref[:, 0:K, :] = left
    x9_ref[:, K:2 * K, :] = x
    x9_ref[:, 2 * K:KK, :] = right

    # ---- Loop-invariant operands, hoisted (broadcasts are not CSE'd) ----
    w9 = w_ref[...]                                                # (COUT, 9)
    bias = jnp.broadcast_to(b_ref[...], (COUT, HW))                # (COUT, HW)
    # TODO(synk): bias could be folded in as a 10th ones-row of x9 to drop the vadds;
    # kept explicit for clarity since the kernel is HBM-writeback bound.

    # ---- One fused (COUT,9)x(9,HW) MXU matmul per image; pl.loop bounds live ranges ----
    @pl.loop(0, nb)
    def _(i):
        acc = jnp.dot(w9, x9_ref[i], preferred_element_type=jnp.float32)  # (COUT, HW)
        o_ref[i] = (acc + bias).astype(out_dtype)


def conv1_forward(x_nchw, weight, bias, block_n=128, out_dtype=jnp.float32):
    """x_nchw: (N, 1, H, W); weight: (COUT, 1, K, K); bias: (COUT,).
    Returns (N, COUT, H, W), identical semantics to nn.Conv2d(1, 32, 3, 1, 1)."""
    n = x_nchw.shape[0]
    # Cap the block at ceil(n/2): keeps >=2 grid steps so the "parallel" batch axis can
    # shard across v7x's 2 TensorCores even for modest batches.
    nb = int(min(block_n, max(1, -(-n // 2)))) if n > 1 else 1
    npad = ((n + nb - 1) // nb) * nb             # pad batch to a multiple of the block

    x = x_nchw[:, 0, :, :].astype(jnp.float32)   # (n, H, W); Cin == 1 squeezed
    if npad != n:
        x = jnp.pad(x, ((0, npad - n), (0, 0), (0, 0)))
    # Zero-pad rows only (padding=1 along H); columns are handled in-kernel with lane rolls.
    x_hpad = jnp.pad(x, ((0, 0), (1, 1), (0, 0)))                            # (npad, H+2, W)
    # Three row-shifted slabs, flattened to lane-dense rows of length H*W = 256.
    slabs = jnp.stack([x_hpad[:, ky:ky + H, :] for ky in range(K)], axis=1)  # (npad, 3, H, W)
    slabs = slabs.reshape(npad, K, HW)

    # Fused weights: w9[c, kx*3 + ky] = weight[c, 0, ky, kx]  (matches x9 row order:
    # rows 0-2 = kx=0 taps, 3-5 = kx=1, 6-8 = kx=2, each in ky order).
    w9 = jnp.transpose(weight[:, 0, :, :], (0, 2, 1)).reshape(COUT, KK).astype(jnp.float32)
    b_mat = bias.reshape(COUT, 1).astype(jnp.float32)

    out_flat = pl.pallas_call(
        functools.partial(conv3x3_kernel, nb=nb, out_dtype=out_dtype),
        out_shape=jax.ShapeDtypeStruct((npad, COUT, HW), out_dtype),
        grid_spec=pltpu.PrefetchScalarGridSpec(
            num_scalar_prefetch=0,
            grid=(npad // nb,),
            in_specs=[
                pl.BlockSpec((nb, K, HW), lambda i: (i, 0, 0)),
                pl.BlockSpec((COUT, KK), lambda i: (0, 0)),
                pl.BlockSpec((COUT, 1), lambda i: (0, 0)),
            ],
            out_specs=pl.BlockSpec((nb, COUT, HW), lambda i: (i, 0, 0)),
            scratch_shapes=[pltpu.VMEM((nb, KK, HW), jnp.float32)],
        ),
        compiler_params=pltpu.CompilerParams(
            dimension_semantics=("parallel",),
            # ~16 MiB used at nb=128 (2x1 MiB in, 2x4 MiB out, 2 MiB scratch + temps);
            # 48 MiB leaves headroom for block_n up to 256 and fits v7x's 64 MiB VMEM.
            vmem_limit_bytes=48 * 1024 * 1024,
        ),
    )(slabs, w9, b_mat)

    # (npad, COUT, H*W) is already NCHW order: the reshape below is a free metadata reshape.
    return out_flat[:n].reshape(n, COUT, H, W)


if __name__ == "__main__":
    key = jax.random.PRNGKey(0)
    k_x, k_w, k_b = jax.random.split(key, 3)

    N = 2
    x = jax.random.normal(k_x, (N, 1, H, W), dtype=jnp.float32)
    # Deterministic parameter init (PyTorch-like uniform in +/- 1/sqrt(fan_in)).
    fan_in = 1 * K * K
    bound = 1.0 / (fan_in ** 0.5)
    weight = jax.random.uniform(k_w, (COUT, 1, K, K), jnp.float32, -bound, bound)
    bias = jax.random.uniform(k_b, (COUT,), jnp.float32, -bound, bound)

    out = conv1_forward(x, weight, bias)
    out = jax.block_until_ready(out)

    # Sanity check against XLA's conv (same semantics as nn.Conv2d(1, 32, 3, 1, 1)).
    ref = jax.lax.conv_general_dilated(
        x, weight, window_strides=(1, 1), padding=((1, 1), (1, 1)),
        dimension_numbers=("NCHW", "OIHW", "NCHW")) + bias[None, :, None, None]
    assert out.shape == (N, COUT, H, W)
    assert jnp.allclose(out, ref, atol=1e-4, rtol=1e-4)

    print("KERNEL_OK")
</pallas_src>

<mosaic_0001>
module attributes {stable_mosaic.version = 11 : i64} {
  func.func @conv3x3_kernel(%arg0: i32, %arg1: memref<1x3x256xf32, #tpu.memory_space<vmem>>, %arg2: memref<32x9xf32, #tpu.memory_space<vmem>>, %arg3: memref<32x1xf32, #tpu.memory_space<vmem>>, %arg4: memref<1x32x256xf32, #tpu.memory_space<vmem>>, %arg5: memref<1x9x256xf32, #tpu.memory_space<vmem>>) attributes {dimension_semantics = [#tpu.dimension_semantics<parallel>], iteration_bounds = array<i64: 2>, scalar_prefetch = 0 : i64, scratch_operands = 1 : i64, tpu.core_type = #tpu.core_type<tc>, window_params = [{transform_indices = @transform_0, window_bounds = array<i64: 1, 3, 256>}, {pipeline_mode = #tpu.pipeline_mode<synchronous>, transform_indices = @transform_1, window_bounds = array<i64: 32, 9>}, {pipeline_mode = #tpu.pipeline_mode<synchronous>, transform_indices = @transform_2, window_bounds = array<i64: 32, 1>}, {transform_indices = @transform_3, window_bounds = array<i64: 1, 32, 256>}]} {
    %c0 = arith.constant 0 : index
    %c0_0 = arith.constant 0 : index
    %c0_1 = arith.constant 0 : index
    %0 = vector.load %arg1[%c0, %c0_0, %c0_1] : memref<1x3x256xf32, #tpu.memory_space<vmem>>, vector<1x3x256xf32>
    %1 = tpu.iota {dimensions = array<i32: 2>} : vector<1x3x256xi32>
    %c16_i32 = arith.constant 16 : i32
    %c0_i32 = arith.constant 0 : i32
    %2 = arith.cmpi eq, %c16_i32, %c0_i32 : i32
    %c1_i32 = arith.constant 1 : i32
    %3 = arith.select %2, %c1_i32, %c16_i32 : i32
    %4 = vector.broadcast %3 : i32 to vector<1x3x256xi32>
    %5 = arith.remsi %1, %4 : vector<1x3x256xi32>
    %c0_i32_2 = arith.constant 0 : i32
    %6 = vector.broadcast %c0_i32_2 : i32 to vector<1x3x256xi32>
    %7 = arith.cmpi ne, %5, %6 : vector<1x3x256xi32>
    %c0_i32_3 = arith.constant 0 : i32
    %8 = vector.broadcast %c0_i32_3 : i32 to vector<1x3x256xi32>
    %9 = arith.cmpi slt, %5, %8 : vector<1x3x256xi32>
    %c0_i32_4 = arith.constant 0 : i32
    %10 = arith.cmpi slt, %3, %c0_i32_4 : i32
    %11 = vector.broadcast %10 : i1 to vector<1x3x256xi1>
    %12 = vector.broadcast %11 : vector<1x3x256xi1> to vector<1x3x256xi1>
    %13 = arith.xori %9, %12 : vector<1x3x256xi1>
    %14 = arith.andi %13, %7 : vector<1x3x256xi1>
    %15 = vector.broadcast %3 : i32 to vector<1x3x256xi32>
    %16 = arith.addi %5, %15 : vector<1x3x256xi32>
    %17 = arith.select %14, %16, %5 : vector<1x3x256xi1>, vector<1x3x256xi32>
    %c0_i32_5 = arith.constant 0 : i32
    %18 = vector.broadcast %c0_i32_5 : i32 to vector<1x3x256xi32>
    %19 = arith.cmpi ne, %17, %18 : vector<1x3x256xi32>
    %c15_i32 = arith.constant 15 : i32
    %20 = vector.broadcast %c15_i32 : i32 to vector<1x3x256xi32>
    %21 = arith.cmpi ne, %17, %20 : vector<1x3x256xi32>
    %c1_i32_6 = arith.constant 1 : i32
    %22 = tpu.dynamic_rotate %0 by %c1_i32_6 dim 2 : vector<1x3x256xf32>, i32 -> vector<1x3x256xf32>
    %cst = arith.constant 0.000000e+00 : f32
    %23 = vector.broadcast %cst : f32 to vector<1x3x256xf32>
    %24 = arith.select %19, %22, %23 : vector<1x3x256xi1>, vector<1x3x256xf32>
    %c255_i32 = arith.constant 255 : i32
    %25 = tpu.dynamic_rotate %0 by %c255_i32 dim 2 : vector<1x3x256xf32>, i32 -> vector<1x3x256xf32>
    %cst_7 = arith.constant 0.000000e+00 : f32
    %26 = vector.broadcast %cst_7 : f32 to vector<1x3x256xf32>
    %27 = arith.select %21, %25, %26 : vector<1x3x256xi1>, vector<1x3x256xf32>
    %c0_8 = arith.constant 0 : index
    %c0_9 = arith.constant 0 : index
    %c0_10 = arith.constant 0 : index
    %28 = vector.load %arg5[%c0_8, %c0_9, %c0_10] : memref<1x9x256xf32, #tpu.memory_space<vmem>>, vector<1x3x256xf32>
    tpu.vector_store %arg5[%c0_8, %c0_9, %c0_10], %24 {strides = array<i32>} : memref<1x9x256xf32, #tpu.memory_space<vmem>>, vector<1x3x256xf32>,
    %c0_11 = arith.constant 0 : index
    %c3 = arith.constant 3 : index
    %c0_12 = arith.constant 0 : index
    %29 = vector.load %arg5[%c0_11, %c3, %c0_12] : memref<1x9x256xf32, #tpu.memory_space<vmem>>, vector<1x3x256xf32>
    tpu.vector_store %arg5[%c0_11, %c3, %c0_12], %0 {strides = array<i32>} : memref<1x9x256xf32, #tpu.memory_space<vmem>>, vector<1x3x256xf32>,
    %c0_13 = arith.constant 0 : index
    %c6 = arith.constant 6 : index
    %c0_14 = arith.constant 0 : index
    %30 = vector.load %arg5[%c0_13, %c6, %c0_14] : memref<1x9x256xf32, #tpu.memory_space<vmem>>, vector<1x3x256xf32>
    tpu.vector_store %arg5[%c0_13, %c6, %c0_14], %27 {strides = array<i32>} : memref<1x9x256xf32, #tpu.memory_space<vmem>>, vector<1x3x256xf32>,
    %c0_15 = arith.constant 0 : index
    %c0_16 = arith.constant 0 : index
    %31 = vector.load %arg2[%c0_15, %c0_16] : memref<32x9xf32, #tpu.memory_space<vmem>>, vector<32x9xf32>
    %c0_17 = arith.constant 0 : index
    %c0_18 = arith.constant 0 : index
    %32 = vector.load %arg3[%c0_17, %c0_18] : memref<32x1xf32, #tpu.memory_space<vmem>>, vector<32x1xf32>
    %33 = vector.shape_cast %32 : vector<32x1xf32> to vector<32x1xf32>
    %34 = vector.broadcast %33 : vector<32x1xf32> to vector<32x256xf32>
    %c0_i32_19 = arith.constant 0 : i32
    %c1_i32_20 = arith.constant 1 : i32
    %35 = arith.muli %c0_i32_19, %c1_i32_20 : i32
    %c0_i32_21 = arith.constant 0 : i32
    %36 = arith.addi %c0_i32_21, %35 : i32
    %37 = arith.index_cast %36 : i32 to index
    %c0_22 = arith.constant 0 : index
    %c0_23 = arith.constant 0 : index
    %38 = vector.load %arg5[%37, %c0_22, %c0_23] : memref<1x9x256xf32, #tpu.memory_space<vmem>>, vector<1x9x256xf32>
    %39 = vector.shape_cast %38 : vector<1x9x256xf32> to vector<9x256xf32>
    %cst_24 = arith.constant dense<0.000000e+00> : vector<32x256xf32>
    %40 = tpu.matmul %31, %39, %cst_24 {dimension_numbers = #tpu.dot_dimension_numbers<[1], [0], [0], [1], [0, 0, 1, 1], [], []>} : vector<32x9xf32>, vector<9x256xf32>, vector<32x256xf32> -> vector<32x256xf32>
    %41 = arith.addf %40, %34 : vector<32x256xf32>
    %42 = arith.index_cast %36 : i32 to index
    %c0_25 = arith.constant 0 : index
    %c0_26 = arith.constant 0 : index
    %43 = vector.load %arg4[%42, %c0_25, %c0_26] : memref<1x32x256xf32, #tpu.memory_space<vmem>>, vector<1x32x256xf32>
    %44 = vector.shape_cast %43 : vector<1x32x256xf32> to vector<32x256xf32>
    %45 = vector.shape_cast %41 : vector<32x256xf32> to vector<1x32x256xf32>
    tpu.vector_store %arg4[%42, %c0_25, %c0_26], %45 {strides = array<i32>} : memref<1x32x256xf32, #tpu.memory_space<vmem>>, vector<1x32x256xf32>,
    %c1_i32_27 = arith.constant 1 : i32
    return
  }
  func.func @transform_0(%arg0: i32) -> (i32, i32, i32) {
    %c0_i32 = arith.constant 0 : i32
    %c0_i32_0 = arith.constant 0 : i32
    %c0_i32_1 = arith.constant 0 : i32
    return %arg0, %c0_i32, %c0_i32_0 : i32, i32, i32
  }
  func.func @transform_1(%arg0: i32) -> (i32, i32) {
    %c0_i32 = arith.constant 0 : i32
    %c0_i32_0 = arith.constant 0 : i32
    %c0_i32_1 = arith.constant 0 : i32
    return %c0_i32, %c0_i32_0 : i32, i32
  }
  func.func @transform_2(%arg0: i32) -> (i32, i32) {
    %c0_i32 = arith.constant 0 : i32
    %c0_i32_0 = arith.constant 0 : i32
    %c0_i32_1 = arith.constant 0 : i32
    return %c0_i32, %c0_i32_0 : i32, i32
  }
  func.func @transform_3(%arg0: i32) -> (i32, i32, i32) {
    %c0_i32 = arith.constant 0 : i32
    %c0_i32_0 = arith.constant 0 : i32
    %c0_i32_1 = arith.constant 0 : i32
    return %arg0, %c0_i32, %c0_i32_0 : i32, i32, i32
  }
}

</mosaic_0001>

<llo_original>
// kernel: tpu_custom_call.1
$region0: #{tpu_custom_call.1}
  #allocation0 [shape = 'u32[]', space=smem, size = 0x4, offset = 0x4, fixed_abs, tag = 'smem constant byte address 0x4 - core index']
  #allocation1 [shape = 'u32[144,128]{1,0:T(1,128)}', space=vmem, size = 0x12000, scoped, tag = 'internal scratch']
  #allocation2 [shape = 'f32[1,9,256]{2,1,0:T(8,128)}', space=vmem, size = 0x4000, scoped, tag = 'scratch operand']
  %s0 = inlined_call_operand.vmem [shape: f32[2,3,256], index: 0, kind: input, shape index: {}]
  %s1 = inlined_call_operand.vmem [shape: f32[32,9], index: 1, kind: input, shape index: {}]
  %s2 = inlined_call_operand.vmem [shape: f32[32,1], index: 2, kind: input, shape index: {}]
  %s3 = inlined_call_operand.hbm [shape: f32[2,32,256], index: 3, kind: output, shape index: {}]
  %s4 = sld [smem:[#allocation0]]
  $region45: #{tpu_custom_call.1} parent=0
    _
  %s6 = ssub.s32 1, %s4
  %s7 = scalar_select 0, %s6, %s4
  $region1: #{tpu_custom_call.1} parent=0
    #allocation3 [shape = 'u8[65536]{0}', space=vmem, size = 0x10000, scoped, tag = 'output window, operand 0']
    #allocation4 [shape = 's32[2]{0}', space=sflag, size = 0x8, scoped, tag = 'scoped memory for tpu_custom_call.1']
    %8 = vsyncpa [#allocation4], 0
    %s9 = scalar_lea.sflag [#allocation4], 1
    %10 = vsyncpa %s9, 0
    loop: start=0, step=1, limit=4
    $region2: #{tpu_custom_call.1} parent=1 // loop_pre_header
      _
    $region3: #{tpu_custom_call.1} parent=1 // loop_header
      %s12 = sphi 0, %s16
      %p13 = scmp.ge.s32.totalorder %s12, 4
      %s22 = sphi 0, %s24
      %s25 = sphi 0, %s22
      %s26 = sphi 0, %s25
      %s42 = sphi 0, %s26
      %s46 = sphi 0, %s46
      %s48 = sphi 0, %s46
      %s49 = sphi 0, %s48
      %s63 = sphi 0, %s49
      %s67 = sphi 0, %s67
      %s69 = sphi 0, %s67
      %s70 = sphi 0, %s69
      %s84 = sphi 0, %s70
      %s90 = sphi 0, %s92
      %s93 = sphi 0, %s90
      %s94 = sphi 0, %s93
      %s110 = sphi 0, %s94
    $region4: #{tpu_custom_call.1} parent=1 // loop_header_branch
      %15 = sbr.rel (%p13) target = $region8
    $region5: #{tpu_custom_call.1} parent=1 // loop_body
      %s17 = ssub.s32 %s12, 1
      %s18 = ssub.s32 %s12, 2
      %s19 = sadd.s32 %s12, 1
      %s20 = ssub.s32 %s12, %s19
      %p21 = scmp.eq.s32.totalorder %s20, 0
      %s23 = sadd.s32 %s22, 1
      %s24 = scalar_select %p21, %s22, %s23
      %p27 = pneg %p21
      %p28 = scmp.eq.s32.totalorder %s12, 1
      %p29 = por %p27, %p28
      %p30 = scmp.ne.s32.totalorder %s22, %s25
      %p31 = scmp.eq.s32.totalorder %s12, 0
      %p32 = por %p30, %p31
      %p33 = scmp.ne.s32.totalorder %s22, %s25
      %p34 = scmp.eq.s32.totalorder %s17, 1
      %p35 = por %p33, %p34
      %p36 = scmp.ne.s32.totalorder %s25, %s26
      %p37 = scmp.eq.s32.totalorder %s17, 0
      %p38 = por %p36, %p37
      %p39 = scmp.ne.s32.totalorder %s25, %s26
      %p40 = scmp.eq.s32.totalorder %s18, 1
      %p41 = por %p39, %p40
      %p43 = scmp.ne.s32.totalorder %s26, %s42
      %p44 = scmp.eq.s32.totalorder %s18, 0
      %p45 = por %p43, %p44
      %s47 = sadd.s32 %s46, 1
      %p50 = scmp.eq.s32.totalorder %s12, 1
      %p51 = scmp.ne.s32.totalorder %s46, %s48
      %p52 = scmp.eq.s32.totalorder %s12, 0
      %p53 = por %p51, %p52
      %p54 = scmp.ne.s32.totalorder %s46, %s48
      %p55 = scmp.eq.s32.totalorder %s17, 1
      %p56 = por %p54, %p55
      %p57 = scmp.ne.s32.totalorder %s48, %s49
      %p58 = scmp.eq.s32.totalorder %s17, 0
      %p59 = por %p57, %p58
      %p60 = scmp.ne.s32.totalorder %s48, %s49
      %p61 = scmp.eq.s32.totalorder %s18, 1
      %p62 = por %p60, %p61
      %p64 = scmp.ne.s32.totalorder %s49, %s63
      %p65 = scmp.eq.s32.totalorder %s18, 0
      %p66 = por %p64, %p65
      %s68 = sadd.s32 %s67, 1
      %p71 = scmp.eq.s32.totalorder %s12, 1
      %p72 = scmp.ne.s32.totalorder %s67, %s69
      %p73 = scmp.eq.s32.totalorder %s12, 0
      %p74 = por %p72, %p73
      %p75 = scmp.ne.s32.totalorder %s67, %s69
      %p76 = scmp.eq.s32.totalorder %s17, 1
      %p77 = por %p75, %p76
      %p78 = scmp.ne.s32.totalorder %s69, %s70
      %p79 = scmp.eq.s32.totalorder %s17, 0
      %p80 = por %p78, %p79
      %p81 = scmp.ne.s32.totalorder %s69, %s70
      %p82 = scmp.eq.s32.totalorder %s18, 1
      %p83 = por %p81, %p82
      %p85 = scmp.ne.s32.totalorder %s70, %s84
      %p86 = scmp.eq.s32.totalorder %s18, 0
      %p87 = por %p85, %p86
      %s88 = ssub.s32 %s12, %s19
      %p89 = scmp.eq.s32.totalorder %s88, 0
      %s91 = sadd.s32 %s90, 1
      %s92 = scalar_select %p89, %s90, %s91
      %p95 = pneg %p89
      %p96 = scmp.eq.s32.totalorder %s12, 1
      %p97 = por %p95, %p96
      %p98 = scmp.ne.s32.totalorder %s90, %s93
      %p99 = scmp.eq.s32.totalorder %s12, 0
      %p100 = por %p98, %p99
      %p101 = scmp.ne.s32.totalorder %s90, %s93
      %p102 = scmp.eq.s32.totalorder %s17, 1
      %p103 = por %p101, %p102
      %p104 = scmp.ne.s32.totalorder %s93, %s94
      %p105 = scmp.eq.s32.totalorder %s17, 0
      %p106 = por %p104, %p105
      %p107 = scmp.ne.s32.totalorder %s93, %s94
      %p108 = scmp.eq.s32.totalorder %s18, 1
      %p109 = por %p107, %p108
      %p111 = scmp.ne.s32.totalorder %s94, %s110
      %p112 = scmp.eq.s32.totalorder %s18, 0
      %p113 = por %p111, %p112
      %p114 = scmp.le.s32.totalorder 1, %s12
      %p115 = scmp.lt.s32.totalorder %s12, 3
      %p116 = pnand %p114, %p115
      %p117 = pneg %p116
      // Predicated region
      $region9: #{tpu_custom_call.1} parent=5 // pred_check
        _
      $region10: #{tpu_custom_call.1} parent=5 // pred_check_branch
        %119 = sbr.rel (%p116) target = $region12
      $region11: #{tpu_custom_call.1} parent=5 // pred_region
        %s120 = ssub.s32 %s12, 1
        // Predicated region
        $region13: #{tpu_custom_call.1} parent=11 // pred_check
          %p121 = pneg %p59
        $region14: #{tpu_custom_call.1} parent=11 // pred_check_branch
          %123 = sbr.rel (%p121) target = $region16
        $region15: #{tpu_custom_call.1} parent=11 // pred_region
          _
        $region16: #{tpu_custom_call.1} parent=11 // pred_fallthru
          _
        // Predicated region
        $region17: #{tpu_custom_call.1} parent=11 // pred_check
          %p124 = pneg %p80
        $region18: #{tpu_custom_call.1} parent=11 // pred_check_branch
          %126 = sbr.rel (%p124) target = $region20
        $region19: #{tpu_custom_call.1} parent=11 // pred_region
          _
        $region20: #{tpu_custom_call.1} parent=11 // pred_fallthru
          _
      $region12: #{tpu_custom_call.1} parent=5 // pred_fallthru
        _
      %p127 = scmp.lt.s32.totalorder %s12, 2
      // Predicated region
      $region21: #{tpu_custom_call.1} parent=5 // pred_check
        %p128 = pneg %p127
      $region22: #{tpu_custom_call.1} parent=5 // pred_check_branch
        %130 = sbr.rel (%p128) target = $region24
      $region23: #{tpu_custom_call.1} parent=5 // pred_region
        // Predicated region
        $region25: #{tpu_custom_call.1} parent=23 // pred_check
          %p131 = pneg %p32
        $region26: #{tpu_custom_call.1} parent=23 // pred_check_branch
          %133 = sbr.rel (%p131) target = $region28
        $region27: #{tpu_custom_call.1} parent=23 // pred_region
          %p134 = scmp.lt.s32.totalorder %s12, 1
          %s135 = scalar_select %p134, %s12, 1
          %s136 = smul.addr %s135, 2
          %s137 = smul.addr %s136, 4
          %s138 = scalar_lea.vmem %s0, %s137
        $region28: #{tpu_custom_call.1} parent=23 // pred_fallthru
          _
      $region24: #{tpu_custom_call.1} parent=5 // pred_fallthru
        _
      %p139 = scmp.le.s32.totalorder 1, %s12
      %p140 = scmp.lt.s32.totalorder %s12, 3
      %p141 = pnand %p139, %p140
      %p142 = pneg %p141
      // Predicated region
      $region29: #{tpu_custom_call.1} parent=5 // pred_check
        _
      $region30: #{tpu_custom_call.1} parent=5 // pred_check_branch
        %144 = sbr.rel (%p141) target = $region32
      $region31: #{tpu_custom_call.1} parent=5 // pred_region
        %s145 = ssub.s32 %s12, 1
        %p146 = scmp.lt.s32.totalorder %s17, 1
        %s147 = scalar_select %p146, %s17, 1
        %s148 = smul.addr %s147, 2
        %s149 = smul.addr %s148, 4
        %s150 = scalar_lea.vmem %s0, %s149
        %p151 = pneg %p38
        %p152 = pneg %p35
        %p153 = pneg %p59
        %p154 = pneg %p56
        %p155 = pneg %p80
        %p156 = pneg %p77
        %p157 = pneg %p106
        %p158 = pneg %p103
        %s159 = sand.u32 %s93, 1
        %s160 = scalar_lea.sflag [#allocation4], %s159
        %s161 = sand.u32 %s93, 1
        %s162 = smul.addr %s161, 64
        %s163 = scalar_lea.vmem [#allocation3], %s162
        %p164 = scmp.lt.s32.totalorder %s17, 1
        %s165 = scalar_select %p164, %s17, 1
        %s166 = smul.addr %s165, 2
        %s167 = smul.addr %s166, 4
        %s168 = scalar_lea.vmem %s0, %s167
        %v169 = vld [vmem:[%s168] sm:$0x77]
        %v170 = vlaneseq
        %v171 = vand.u32 %v170, 127
        %v172 = vadd.s32 %v171, 128
        %vm173 = vcmp.lt.s32.totalorder %v171, 0
        %v174 = vsub.s32 0, %v171
        %v175 = vsel %vm173, %v174, %v171
        %v176 = vshrl.u32 %v175, 4
        %v177 = vand.u32 %v175, 15
        %v178 = vsub.s32 0, %v177
        %v179 = vsel %vm173, %v178, %v177
        %vm180 = vcmp.lt.s32.totalorder %v172, 0
        %v181 = vsub.s32 0, %v172
        %v182 = vsel %vm180, %v181, %v172
        %v183 = vshrl.u32 %v182, 4
        %v184 = vand.u32 %v182, 15
        %v185 = vsub.s32 0, %v184
        %v186 = vsel %vm180, %v185, %v184
        %vm187 = vcmp.ne.s32.totalorder %v179, 0
        %vm188 = vcmp.ne.s32.totalorder %v186, 0
        %vm189 = vcmp.lt.s32.totalorder %v179, 0
        %vm190 = vcmp.lt.s32.totalorder %v186, 0
        %vm191 = vmand %vm189, %vm187
        %vm192 = vmand %vm190, %vm188
        %v193 = vadd.s32 %v179, 16
        %v194 = vadd.s32 %v186, 16
        %v195 = vsel %vm191, %v193, %v179
        %v196 = vsel %vm192, %v194, %v186
        %vm197 = vcmp.ne.s32.totalorder %v195, 0
        %vm198 = vcmp.ne.s32.totalorder %v196, 0
        %vm199 = vcmp.ne.s32.totalorder %v195, 15
        %vm200 = vcmp.ne.s32.totalorder %v196, 15
        %v202 = vcombine.high %v169, %v169
        %204 = vrot.lane.b32.xlu0 %v169, 1
        %v205 = vpop.permute.xlu0 %204
        %206 = vrot.lane.b32.xlu0 %v202, 1
        %v207 = vpop.permute.xlu0 %206
        %vm208 = vcmp.lt.s32.totalorder %v171, 1
        %v209 = vsel %vm208, %v205, %v207
        %v210 = vsel %vm208, %v207, %v205
        %v211 = vsel %vm197, %v210, 0.0
        %v212 = vsel %vm198, %v209, 0.0
        %213 = vrot.lane.b32.xlu0 %v169, 127
        %v214 = vpop.permute.xlu0 %213
        %215 = vrot.lane.b32.xlu0 %v202, 127
        %v216 = vpop.permute.xlu0 %215
        %vm217 = vcmp.lt.s32.totalorder %v171, 127
        %v218 = vsel %vm217, %v214, %v216
        %v219 = vsel %vm217, %v216, %v214
        %v220 = vsel %vm199, %v218, 0.0
        %v221 = vsel %vm200, %v219, 0.0
        %222 = vst [vmem:[#allocation2] sm:$0x7] %v211
        %223 = vst [vmem:[#allocation2 + $0x8] sm:$0x7] %v212
        %v224 = vrot.slane %v169, 5
        %v225 = vrot.slane %v202, 5
        %228 = vst [vmem:[#allocation2] sm:$0x38] %v224
        %229 = vst [vmem:[#allocation2 + $0x8] sm:$0x38] %v225
        %v232 = vrot.slane %v220, 2
        %v233 = vrot.slane %v221, 2
        %236 = vst [vmem:[#allocation2] sm:$0xc0] %v232
        %237 = vst [vmem:[#allocation2 + $0x8] sm:$0xc0] %v233
        %238 = vst [vmem:[#allocation2 + $0x10] sm:$0x1] %v232
        %239 = vst [vmem:[#allocation2 + $0x18] sm:$0x1] %v233
        %v240 = vld [vmem:[%s1] sm:$0xff]
        %v241 = vld [vmem:[%s1 + $0x8] sm:$0xff]
        %v242 = vld [vmem:[%s1 + $0x10] sm:$0xff]
        %v243 = vld [vmem:[%s1 + $0x18] sm:$0xff]
        %v244 = vld [vmem:[%s2] sm:$0xff]
        %v245 = vld [vmem:[%s2 + $0x8] sm:$0xff]
        %v246 = vld [vmem:[%s2 + $0x10] sm:$0xff]
        %v247 = vld [vmem:[%s2 + $0x18] sm:$0xff]
        %249 = vset.pattern.permute.xlu0 0
        %250 = vperm.xlu0 %249, %v244
        %v251 = vpop.permute.xlu0 %250
        %254 = vset.pattern.permute.xlu0 0
        %255 = vperm.xlu0 %254, %v245
        %v256 = vpop.permute.xlu0 %255
        %259 = vset.pattern.permute.xlu0 0
        %260 = vperm.xlu0 %259, %v246
        %v261 = vpop.permute.xlu0 %260
        %264 = vset.pattern.permute.xlu0 0
        %265 = vperm.xlu0 %264, %v247
        %v266 = vpop.permute.xlu0 %265
        %v268 = vld [vmem:[#allocation2] sm:$0xff]
        %v269 = vld [vmem:[#allocation2 + $0x8] sm:$0xff]
        %v270 = vld [vmem:[#allocation2 + $0x10] sm:$0x1]
        %v271 = vld [vmem:[#allocation2 + $0x18] sm:$0x1]
        %vm272 = vcmask 72704
        %v274 = vsel %vm272, %v240, 0
        %v277 = vsel %vm272, %v241, 0
        %v280 = vsel %vm272, %v242, 0
        %v283 = vsel %vm272, %v243, 0
        %vm285 = vcmask 1040384
        %v287 = vsel %vm285, %v270, 0
        %v290 = vsel %vm285, %v271, 0
        %292 = vmatprep.subr.mxu0 %v269
        %293 = vmatpush1.msra.mxu0 %v268
        %294 = vmatprep.subr.mxu0 %v290
        %295 = vmatpush1.msra.mxu0 %v287
        %296 = vmatprep.subr.mxu0 0.0
        %297 = vmatpush1.msra.mxu0 0.0
        %298 = vmatprep.subr.mxu0 0.0
        %299 = vmatpush1.msra.mxu0 0.0
        %300 = vmatprep.subr.mxu0 0.0
        %301 = vmatpush1.msra.mxu0 0.0
        %302 = vmatprep.subr.mxu0 0.0
        %303 = vmatpush1.msra.mxu0 0.0
        %304 = vmatprep.subr.mxu0 0.0
        %305 = vmatpush1.msra.mxu0 0.0
        %306 = vmatprep.subr.mxu0 0.0
        %307 = vmatpush1.msra.mxu0 0.0
        %308 = vmatprep.subr.mxu0 0.0
        %309 = vmatpush1.msra.mxu0 0.0
        %310 = vmatprep.subr.mxu0 0.0
        %311 = vmatpush1.msra.mxu0 0.0
        %312 = vmatprep.subr.mxu0 0.0
        %313 = vmatpush1.msra.mxu0 0.0
        %314 = vmatprep.subr.mxu0 0.0
        %315 = vmatpush1.msra.mxu0 0.0
        %316 = vmatprep.subr.mxu0 0.0
        %317 = vmatpush1.msra.mxu0 0.0
        %318 = vmatprep.subr.mxu0 0.0
        %319 = vmatpush1.msra.mxu0 0.0
        %320 = vmatprep.subr.mxu0 0.0
        %321 = vmatpush1.msra.mxu0 0.0
        %322 = vmatprep.subr.mxu0 0.0
        %323 = vmatpush1.msra.mxu0 0.0
        %324 = vmatprep.subr.mxu0 0.0
        %325 = vmatpush1.msra.mxu0 0.0
        %326 = vmatprep.subr.mxu0 0.0
        %327 = vmatpush1.msra.mxu0 0.0
        %328 = vmatprep.subr.mxu0 0.0
        %329 = vmatpush1.msra.mxu0 0.0
        %330 = vmatprep.subr.mxu0 0.0
        %331 = vmatpush1.msra.mxu0 0.0
        %332 = vmatprep.subr.mxu0 0.0
        %333 = vmatpush1.msra.mxu0 0.0
        %334 = vmatprep.subr.mxu0 0.0
        %335 = vmatpush1.msra.mxu0 0.0
        %336 = vmatprep.subr.mxu0 0.0
        %337 = vmatpush1.msra.mxu0 0.0
        %338 = vmatprep.subr.mxu0 0.0
        %339 = vmatpush1.msra.mxu0 0.0
        %340 = vmatprep.subr.mxu0 0.0
        %341 = vmatpush1.msra.mxu0 0.0
        %342 = vmatprep.subr.mxu0 0.0
        %343 = vmatpush1.msra.mxu0 0.0
        %344 = vmatprep.subr.mxu0 0.0
        %345 = vmatpush1.msra.mxu0 0.0
        %346 = vmatprep.subr.mxu0 0.0
        %347 = vmatpush1.msra.mxu0 0.0
        %348 = vmatprep.subr.mxu0 0.0
        %349 = vmatpush1.msra.mxu0 0.0
        %350 = vmatprep.subr.mxu0 0.0
        %351 = vmatpush1.msra.mxu0 0.0
        %352 = vmatprep.subr.mxu0 0.0
        %353 = vmatpush1.msra.mxu0 0.0
        %354 = vmatprep.subr.mxu0 0.0
        %355 = vmatpush1.msra.mxu0 0.0
        %356 = vmatprep.mubr.f32.mxu0 0.0
        %357 = vmatmul.mubr.f32.gmra.mrb[0].mxu0 %v274
        %v358 = vpop.f32.mrb[0].mxu0
        %v359 = vadd.f32 %v251, %v358
        %v360 = vpop.f32.mrb[0].mxu0
        %v361 = vadd.f32 %v251, %v360
        %362 = vmatprep.mubr.f32.mxu0 0.0
        %363 = vmatmul.mubr.f32.gmra.mrb[0].mxu0 %v277
        %v364 = vpop.f32.mrb[0].mxu0
        %v365 = vadd.f32 %v256, %v364
        %v366 = vpop.f32.mrb[0].mxu0
        %v367 = vadd.f32 %v256, %v366
        %368 = vmatprep.mubr.f32.mxu0 0.0
        %369 = vmatmul.mubr.f32.gmra.mrb[0].mxu0 %v280
        %v370 = vpop.f32.mrb[0].mxu0
        %v371 = vadd.f32 %v261, %v370
        %v372 = vpop.f32.mrb[0].mxu0
        %v373 = vadd.f32 %v261, %v372
        %374 = vmatprep.mubr.f32.mxu0 0.0
        %375 = vmatmul.mubr.f32.gmra.mrb[0].mxu0 %v283
        %v376 = vpop.f32.mrb[0].mxu0
        %v377 = vadd.f32 %v266, %v376
        %v378 = vpop.f32.mrb[0].mxu0
        %v379 = vadd.f32 %v266, %v378
        %380 = vdwg.mxu0
        %381 = vst [vmem:[%s163] sm:$0xff] %v359
        %382 = vst [vmem:[%s163 + $0x8] sm:$0xff] %v361
        %383 = vst [vmem:[%s163 + $0x10] sm:$0xff] %v365
        %384 = vst [vmem:[%s163 + $0x18] sm:$0xff] %v367
        %385 = vst [vmem:[%s163 + $0x20] sm:$0xff] %v371
        %386 = vst [vmem:[%s163 + $0x28] sm:$0xff] %v373
        %387 = vst [vmem:[%s163 + $0x30] sm:$0xff] %v377
        %388 = vst [vmem:[%s163 + $0x38] sm:$0xff] %v379
        %s389 = sand.u32 %s93, 1
        %s390 = scalar_lea.sflag [#allocation4], %s389
        %s391 = sand.u32 %s93, 1
        %s392 = smul.addr %s391, 64
        %s393 = scalar_lea.vmem [#allocation3], %s392
        // Predicated region
        $region33: #{tpu_custom_call.1} parent=31 // pred_check
          %p394 = pneg %p103
        $region34: #{tpu_custom_call.1} parent=31 // pred_check_branch
          %396 = sbr.rel (%p394) target = $region36
        $region35: #{tpu_custom_call.1} parent=31 // pred_region
          %s398 = ssub.s32 1024, 1024
          %399 = vsyncadd %s390, %s398
          %s400 = smul.addr %s17, 8
          %s401 = smul.addr %s400, 128
          %s402 = scalar_lea.hbm %s3, %s401
          %s403 = sshll.u32 %s393, 4
          %s404 = int_to_ptr.vmem [resolvable:$true] %s403
          %409 = dma.vmem_to_hbm [thread:$0]  %s404, 1024, %s402, %s390, 256, 256, 16
        $region36: #{tpu_custom_call.1} parent=31 // pred_fallthru
          _
      $region32: #{tpu_custom_call.1} parent=5 // pred_fallthru
        _
      %p410 = scmp.le.s32.totalorder 2, %s12
      // Predicated region
      $region37: #{tpu_custom_call.1} parent=5 // pred_check
        %p411 = pneg %p410
      $region38: #{tpu_custom_call.1} parent=5 // pred_check_branch
        %413 = sbr.rel (%p411) target = $region40
      $region39: #{tpu_custom_call.1} parent=5 // pred_region
        %s414 = ssub.s32 %s12, 2
        // Predicated region
        $region41: #{tpu_custom_call.1} parent=39 // pred_check
          %p415 = pneg %p109
        $region42: #{tpu_custom_call.1} parent=39 // pred_check_branch
          %417 = sbr.rel (%p415) target = $region44
        $region43: #{tpu_custom_call.1} parent=39 // pred_region
          %s418 = sand.u32 %s94, 1
          %s419 = scalar_lea.sflag [#allocation4], %s418
          %s420 = sand.u32 %s94, 1
          %s421 = smul.addr %s420, 64
          %s422 = scalar_lea.vmem [#allocation3], %s421
          %423 = dma.done %s419, 1024
        $region44: #{tpu_custom_call.1} parent=39 // pred_fallthru
          _
      $region40: #{tpu_custom_call.1} parent=5 // pred_fallthru
        _
    $region6: #{tpu_custom_call.1} parent=1 // loop_footer
      %s16 = sadd.s32 1, %s12
    $region7: #{tpu_custom_call.1} parent=1 // loop_footer_branch
      %11 = sbr.rel target = $region3
    $region8: #{tpu_custom_call.1} parent=1 // loop_exit
      _
    %424 = vsyncpa [#allocation4], 1
    %s425 = scalar_lea.sflag [#allocation4], 1
    %426 = vsyncpa %s425, 1

</llo_original>
